<compile_context>
chip_gen: v5e
topology: v5e:2x2
jax: 0.10.0
libtpu: 0.0.40
codegen_flags: <defaults>
</compile_context>

<pallas_src>
import jax
import jax.numpy as jnp
from jax.experimental import pallas as pl
from jax.experimental.pallas import tpu as pltpu


def _round_up(n, m):
    return ((n + m - 1) // m) * m


def _anomaly_detector_kernel(x_ref, w1_ref, b1_ref, w2_ref, b2_ref,
                             w3_ref, b3_ref, o_ref):
    # ---- fc1 : the only real contraction -> MXU, f32 accumulation ----
    h1 = jnp.dot(x_ref[...], w1_ref[...], preferred_element_type=jnp.float32)

    # Move batch to the lane axis once (single XLU transpose); all following
    # elementwise work runs on compact (n_feat, tb) layouts instead of the
    # lane-padded (tb, n_feat) ones.
    h1t = jnp.transpose(h1)                             # (10, tb)
    h1t = jnp.maximum(h1t + b1_ref[...], 0.0)           # b1: (10, 1)

    # ---- fc2 + relu : tiny matmul on the otherwise-idle MXU ----
    h2t = jnp.dot(w2_ref[...], h1t,
                  preferred_element_type=jnp.float32)   # (5, 10)@(10, tb) -> (5, tb)
    h2t = jnp.maximum(h2t + b2_ref[...], 0.0)           # b2: (5, 1)

    # ---- fc3 + sigmoid : 5-term sublane reduction -> lane-dense (1, tb) row ----
    logits = jnp.sum(h2t * w3_ref[...], axis=0, keepdims=True) + b3_ref[...]
    o_ref[...] = jax.nn.sigmoid(logits).astype(o_ref.dtype)


def _pick_tile_and_vmem(B, F, itemsize, tile_bytes):
    """Batch-tile size (multiple of 256, or exactly B for tiny batches) and an
    accurate VMEM limit for this TPU generation."""
    try:
        vmem_cap = int(pltpu.get_tpu_info().vmem_capacity_bytes)
    except Exception:
        vmem_cap = 64 << 20                      # be conservative (v7x per-TC)

    weight_bytes = 4 * (F * 10 + 10 + 5 * 10 + 5 + 5 + 1)

    # Per-row VMEM cost: 2 pipeline buffers of x (+1 slack for an operand
    # copy), lane-padded f32 intermediates (raw h1 plus the transposed
    # h1/h2/logits rows), and 2 pipeline buffers of the f32 output row.
    row_bytes = 3 * F * itemsize + 768 + 8
    fixed_bytes = 2 * weight_bytes + (4 << 20)   # double-buffered weights + misc

    # Target ~tile_bytes of x per buffer, MXU-aligned, clamped to ~45% of VMEM.
    budget = int(vmem_cap * 0.45)
    tb = _round_up(max(tile_bytes // (itemsize * F), 1), 256)
    tb = min(tb, 32768)
    max_tb = max(256, ((budget - fixed_bytes) // row_bytes) // 256 * 256)
    tb = min(tb, max_tb)

    if B <= 256:
        tb = B                                   # one exact full block, no masking
    elif tb >= B:
        # Ensure >= 2 grid steps so v7x's two TensorCores can split the batch.
        tb = _round_up(pl.cdiv(B, 2), 256)

    need = tb * row_bytes + fixed_bytes + (4 << 20)
    vmem_limit = int(min(max(need, 16 << 20), int(vmem_cap * 0.9)))
    return tb, vmem_limit


def anomaly_detector_forward(x, params, *, tile_bytes=4 << 20):
    """x: (B, input_dim).  Returns (B, 1) float32, like the PyTorch module."""
    B, F = x.shape
    w1, b1 = params["w1"], params["b1"]   # (F, 10), (10, 1)
    w2, b2 = params["w2"], params["b2"]   # (5, 10) torch (out, in), (5, 1)
    w3, b3 = params["w3"], params["b3"]   # (5, 1),  (1, 1)

    tb, vmem_limit = _pick_tile_and_vmem(B, F, x.dtype.itemsize, tile_bytes)
    grid = (pl.cdiv(B, tb),)              # ragged last block is masked by Pallas

    full = lambda arr: pl.BlockSpec(arr.shape, lambda i: (0, 0))

    out_row = pl.pallas_call(
        _anomaly_detector_kernel,
        out_shape=jax.ShapeDtypeStruct((1, B), jnp.float32),
        grid_spec=pltpu.PrefetchScalarGridSpec(
            num_scalar_prefetch=0,
            grid=grid,
            in_specs=[
                pl.BlockSpec((tb, F), lambda i: (i, 0)),        # x tile
                full(w1), full(b1),
                full(w2), full(b2),
                full(w3), full(b3),
            ],
            out_specs=pl.BlockSpec((1, tb), lambda i: (0, i)),  # lane-dense row
        ),
        compiler_params=pltpu.CompilerParams(
            dimension_semantics=("parallel",),   # v7x shards the batch axis
            vmem_limit_bytes=vmem_limit,
        ),
    )(x, w1, b1, w2, b2, w3, b3)

    return out_row.reshape(B, 1)          # (1, B) -> (B, 1), layout-free reshape


def init_params(key, input_dim):
    """Same math as the PyTorch module.  w1/w3 stored as (in, out); w2 kept in
    torch (out, in) layout because the kernel contracts it against (10, tb);
    biases stored as columns so they broadcast over the lane (batch) axis."""
    ks = jax.random.split(key, 6)

    def unif(k, shape, fan_in):
        s = 1.0 / jnp.sqrt(jnp.float32(fan_in))
        return jax.random.uniform(k, shape, jnp.float32, -s, s)

    return {
        "w1": unif(ks[0], (input_dim, 10), input_dim),
        "b1": unif(ks[1], (10, 1), input_dim),
        "w2": unif(ks[2], (5, 10), 10),
        "b2": unif(ks[3], (5, 1), 10),
        "w3": unif(ks[4], (5, 1), 5),
        "b3": unif(ks[5], (1, 1), 5),
    }


def reference_forward(x, p):
    h1 = jnp.maximum(x @ p["w1"] + p["b1"].T, 0.0)
    h2 = jnp.maximum(h1 @ p["w2"].T + p["b2"].T, 0.0)
    return jax.nn.sigmoid(h2 @ p["w3"] + p["b3"])


if __name__ == "__main__":
    key = jax.random.PRNGKey(0)
    kx, kp, kx2 = jax.random.split(key, 3)

    batch, input_dim = 16, 32
    params = init_params(kp, input_dim)

    # Small batch: single exact block path.
    x = jax.random.normal(kx, (batch, input_dim), dtype=jnp.float32)
    out = jax.block_until_ready(anomaly_detector_forward(x, params))
    ref = reference_forward(x, params)
    assert out.shape == (batch, 1)
    assert jnp.allclose(out, ref, atol=1e-5, rtol=1e-5)

    # Larger, non-tile-aligned batch: multi-step grid + masked ragged edge.
    batch2 = 300
    x2 = jax.random.normal(kx2, (batch2, input_dim), dtype=jnp.float32)
    out2 = jax.block_until_ready(anomaly_detector_forward(x2, params))
    ref2 = reference_forward(x2, params)
    assert out2.shape == (batch2, 1)
    assert jnp.allclose(out2, ref2, atol=1e-5, rtol=1e-5)

    print("KERNEL_OK")
</pallas_src>

<mosaic_0001>
module attributes {stable_mosaic.version = 11 : i64} {
  func.func @_anomaly_detector_kernel(%arg0: i32, %arg1: memref<16x32xf32, #tpu.memory_space<vmem>>, %arg2: memref<32x10xf32, #tpu.memory_space<vmem>>, %arg3: memref<10x1xf32, #tpu.memory_space<vmem>>, %arg4: memref<5x10xf32, #tpu.memory_space<vmem>>, %arg5: memref<5x1xf32, #tpu.memory_space<vmem>>, %arg6: memref<5x1xf32, #tpu.memory_space<vmem>>, %arg7: memref<1x1xf32, #tpu.memory_space<vmem>>, %arg8: memref<1x16xf32, #tpu.memory_space<vmem>>) attributes {dimension_semantics = [#tpu.dimension_semantics<parallel>], iteration_bounds = array<i64: 1>, scalar_prefetch = 0 : i64, scratch_operands = 0 : i64, tpu.core_type = #tpu.core_type<tc>, window_params = [{transform_indices = @transform_0, window_bounds = array<i64: 16, 32>}, {pipeline_mode = #tpu.pipeline_mode<synchronous>, transform_indices = @transform_1, window_bounds = array<i64: 32, 10>}, {pipeline_mode = #tpu.pipeline_mode<synchronous>, transform_indices = @transform_2, window_bounds = array<i64: 10, 1>}, {pipeline_mode = #tpu.pipeline_mode<synchronous>, transform_indices = @transform_3, window_bounds = array<i64: 5, 10>}, {pipeline_mode = #tpu.pipeline_mode<synchronous>, transform_indices = @transform_4, window_bounds = array<i64: 5, 1>}, {pipeline_mode = #tpu.pipeline_mode<synchronous>, transform_indices = @transform_5, window_bounds = array<i64: 5, 1>}, {pipeline_mode = #tpu.pipeline_mode<synchronous>, transform_indices = @transform_6, window_bounds = array<i64: 1, 1>}, {transform_indices = @transform_7, window_bounds = array<i64: 1, 16>}]} {
    %c0 = arith.constant 0 : index
    %c0_0 = arith.constant 0 : index
    %0 = vector.load %arg1[%c0, %c0_0] : memref<16x32xf32, #tpu.memory_space<vmem>>, vector<16x32xf32>
    %c0_1 = arith.constant 0 : index
    %c0_2 = arith.constant 0 : index
    %1 = vector.load %arg2[%c0_1, %c0_2] : memref<32x10xf32, #tpu.memory_space<vmem>>, vector<32x10xf32>
    %cst = arith.constant dense<0.000000e+00> : vector<16x10xf32>
    %2 = tpu.matmul %0, %1, %cst {dimension_numbers = #tpu.dot_dimension_numbers<[1], [0], [0], [1], [0, 0, 1, 1], [], []>} : vector<16x32xf32>, vector<32x10xf32>, vector<16x10xf32> -> vector<16x10xf32>
    %3 = tpu.transpose %2, [1, 0] : vector<16x10xf32> -> vector<10x16xf32>
    %c0_3 = arith.constant 0 : index
    %c0_4 = arith.constant 0 : index
    %4 = vector.load %arg3[%c0_3, %c0_4] : memref<10x1xf32, #tpu.memory_space<vmem>>, vector<10x1xf32>
    %5 = vector.broadcast %4 : vector<10x1xf32> to vector<10x16xf32>
    %6 = arith.addf %3, %5 : vector<10x16xf32>
    %cst_5 = arith.constant 0.000000e+00 : f32
    %7 = vector.broadcast %cst_5 : f32 to vector<10x16xf32>
    %8 = arith.maximumf %6, %7 : vector<10x16xf32>
    %c0_6 = arith.constant 0 : index
    %c0_7 = arith.constant 0 : index
    %9 = vector.load %arg4[%c0_6, %c0_7] : memref<5x10xf32, #tpu.memory_space<vmem>>, vector<5x10xf32>
    %cst_8 = arith.constant dense<0.000000e+00> : vector<5x16xf32>
    %10 = tpu.matmul %9, %8, %cst_8 {dimension_numbers = #tpu.dot_dimension_numbers<[1], [0], [0], [1], [0, 0, 1, 1], [], []>} : vector<5x10xf32>, vector<10x16xf32>, vector<5x16xf32> -> vector<5x16xf32>
    %c0_9 = arith.constant 0 : index
    %c0_10 = arith.constant 0 : index
    %11 = vector.load %arg5[%c0_9, %c0_10] : memref<5x1xf32, #tpu.memory_space<vmem>>, vector<5x1xf32>
    %12 = vector.broadcast %11 : vector<5x1xf32> to vector<5x16xf32>
    %13 = arith.addf %10, %12 : vector<5x16xf32>
    %cst_11 = arith.constant 0.000000e+00 : f32
    %14 = vector.broadcast %cst_11 : f32 to vector<5x16xf32>
    %15 = arith.maximumf %13, %14 : vector<5x16xf32>
    %c0_12 = arith.constant 0 : index
    %c0_13 = arith.constant 0 : index
    %16 = vector.load %arg6[%c0_12, %c0_13] : memref<5x1xf32, #tpu.memory_space<vmem>>, vector<5x1xf32>
    %17 = vector.broadcast %16 : vector<5x1xf32> to vector<5x16xf32>
    %18 = arith.mulf %15, %17 : vector<5x16xf32>
    %cst_14 = arith.constant dense<0.000000e+00> : vector<16xf32>
    %19 = vector.multi_reduction <add>, %18, %cst_14 [0] : vector<5x16xf32> to vector<16xf32>
    %20 = vector.shape_cast %19 : vector<16xf32> to vector<1x16xf32>
    %c0_15 = arith.constant 0 : index
    %c0_16 = arith.constant 0 : index
    %21 = vector.load %arg7[%c0_15, %c0_16] : memref<1x1xf32, #tpu.memory_space<vmem>>, vector<1x1xf32>
    %22 = vector.broadcast %21 : vector<1x1xf32> to vector<1x16xf32>
    %23 = arith.addf %20, %22 : vector<1x16xf32>
    %24 = arith.negf %23 : vector<1x16xf32>
    %25 = math.exp %24 : vector<1x16xf32>
    %cst_17 = arith.constant 1.000000e+00 : f32
    %26 = vector.broadcast %cst_17 : f32 to vector<1x16xf32>
    %27 = arith.addf %26, %25 : vector<1x16xf32>
    %28 = arith.divf %26, %27 : vector<1x16xf32>
    %c0_18 = arith.constant 0 : index
    %c0_19 = arith.constant 0 : index
    %29 = vector.load %arg8[%c0_18, %c0_19] : memref<1x16xf32, #tpu.memory_space<vmem>>, vector<1x16xf32>
    tpu.vector_store %arg8[%c0_18, %c0_19], %28 {strides = array<i32>} : memref<1x16xf32, #tpu.memory_space<vmem>>, vector<1x16xf32>,
    return
  }
  func.func @transform_0(%arg0: i32) -> (i32, i32) {
    %c0_i32 = arith.constant 0 : i32
    %c0_i32_0 = arith.constant 0 : i32
    return %arg0, %c0_i32 : i32, i32
  }
  func.func @transform_1(%arg0: i32) -> (i32, i32) {
    %c0_i32 = arith.constant 0 : i32
    %c0_i32_0 = arith.constant 0 : i32
    %c0_i32_1 = arith.constant 0 : i32
    return %c0_i32, %c0_i32_0 : i32, i32
  }
  func.func @transform_2(%arg0: i32) -> (i32, i32) {
    %c0_i32 = arith.constant 0 : i32
    %c0_i32_0 = arith.constant 0 : i32
    %c0_i32_1 = arith.constant 0 : i32
    return %c0_i32, %c0_i32_0 : i32, i32
  }
  func.func @transform_3(%arg0: i32) -> (i32, i32) {
    %c0_i32 = arith.constant 0 : i32
    %c0_i32_0 = arith.constant 0 : i32
    %c0_i32_1 = arith.constant 0 : i32
    return %c0_i32, %c0_i32_0 : i32, i32
  }
  func.func @transform_4(%arg0: i32) -> (i32, i32) {
    %c0_i32 = arith.constant 0 : i32
    %c0_i32_0 = arith.constant 0 : i32
    %c0_i32_1 = arith.constant 0 : i32
    return %c0_i32, %c0_i32_0 : i32, i32
  }
  func.func @transform_5(%arg0: i32) -> (i32, i32) {
    %c0_i32 = arith.constant 0 : i32
    %c0_i32_0 = arith.constant 0 : i32
    %c0_i32_1 = arith.constant 0 : i32
    return %c0_i32, %c0_i32_0 : i32, i32
  }
  func.func @transform_6(%arg0: i32) -> (i32, i32) {
    %c0_i32 = arith.constant 0 : i32
    %c0_i32_0 = arith.constant 0 : i32
    %c0_i32_1 = arith.constant 0 : i32
    return %c0_i32, %c0_i32_0 : i32, i32
  }
  func.func @transform_7(%arg0: i32) -> (i32, i32) {
    %c0_i32 = arith.constant 0 : i32
    %c0_i32_0 = arith.constant 0 : i32
    return %c0_i32, %arg0 : i32, i32
  }
}

</mosaic_0001>

<llo_original>
// kernel: tpu_custom_call.1
$region0: #{tpu_custom_call.1}
  #allocation0 [shape = 'u32[]', space=smem, size = 0x4, offset = 0x4, fixed_abs, tag = 'smem constant byte address 0x4 - core index']
  #allocation1 [shape = 'u32[72,128]{1,0:T(1,128)}', space=vmem, size = 0x9000, scoped, tag = 'internal scratch']
  #allocation2 [shape = 'f32[1,1]{1,0:T(1,128)S(1)}', space=vmem, size = 0x200, scoped, tag = 'scoped memory for tpu_custom_call.1']
  %s0 = inlined_call_operand.vmem [shape: f32[16,32], index: 0, kind: input, shape index: {}]
  %s1 = inlined_call_operand.vmem [shape: f32[32,10], index: 1, kind: input, shape index: {}]
  %s2 = inlined_call_operand.vmem [shape: f32[10,1], index: 2, kind: input, shape index: {}]
  %s3 = inlined_call_operand.vmem [shape: f32[5,10], index: 3, kind: input, shape index: {}]
  %s4 = inlined_call_operand.vmem [shape: f32[5,1], index: 4, kind: input, shape index: {}]
  %s5 = inlined_call_operand.vmem [shape: f32[5,1], index: 5, kind: input, shape index: {}]
  %s6 = inlined_call_operand.<no memory space> [shape: f32[1,1], index: 6, kind: input, shape index: {}]
  %s7 = inlined_call_operand.hbm [shape: f32[1,16], index: 7, kind: output, shape index: {}]
  %s8 = sld [smem:[#allocation0]]
  $region38: #{tpu_custom_call.1} parent=0
    _
  %s10 = ssub.s32 1, %s8
  %s11 = scalar_select 0, %s10, %s8
  %v12 = vstv %s6
  %13 = vst [vmem:[#allocation2] sm:$0x1] %v12
  $region1: #{tpu_custom_call.1} parent=0
    #allocation3 [shape = 'u8[512]{0}', space=vmem, size = 0x400, scoped, tag = 'output window, operand 0, single buffered']
    #allocation4 [shape = 's32[1]{0}', space=sflag, size = 0x4, scoped, tag = 'scoped memory for tpu_custom_call.1']
    %14 = vsyncpa [#allocation4], 0
    // Predicated region
    $region2: #{tpu_custom_call.1} parent=1 // pred_check
      _
    $region3: #{tpu_custom_call.1} parent=1 // pred_check_branch
      %16 = sbr.rel (0) target = $region5
    $region4: #{tpu_custom_call.1} parent=1 // pred_region
      _
    $region5: #{tpu_custom_call.1} parent=1 // pred_fallthru
      _
    // Predicated region
    $region6: #{tpu_custom_call.1} parent=1 // pred_check
      _
    $region7: #{tpu_custom_call.1} parent=1 // pred_check_branch
      %18 = sbr.rel (0) target = $region9
    $region8: #{tpu_custom_call.1} parent=1 // pred_region
      _
    $region9: #{tpu_custom_call.1} parent=1 // pred_fallthru
      _
    // Predicated region
    $region10: #{tpu_custom_call.1} parent=1 // pred_check
      _
    $region11: #{tpu_custom_call.1} parent=1 // pred_check_branch
      %20 = sbr.rel (0) target = $region13
    $region12: #{tpu_custom_call.1} parent=1 // pred_region
      _
    $region13: #{tpu_custom_call.1} parent=1 // pred_fallthru
      _
    // Predicated region
    $region14: #{tpu_custom_call.1} parent=1 // pred_check
      _
    $region15: #{tpu_custom_call.1} parent=1 // pred_check_branch
      %22 = sbr.rel (0) target = $region17
    $region16: #{tpu_custom_call.1} parent=1 // pred_region
      _
    $region17: #{tpu_custom_call.1} parent=1 // pred_fallthru
      _
    // Predicated region
    $region18: #{tpu_custom_call.1} parent=1 // pred_check
      _
    $region19: #{tpu_custom_call.1} parent=1 // pred_check_branch
      %24 = sbr.rel (0) target = $region21
    $region20: #{tpu_custom_call.1} parent=1 // pred_region
      _
    $region21: #{tpu_custom_call.1} parent=1 // pred_fallthru
      _
    // Predicated region
    $region22: #{tpu_custom_call.1} parent=1 // pred_check
      _
    $region23: #{tpu_custom_call.1} parent=1 // pred_check_branch
      %26 = sbr.rel (0) target = $region25
    $region24: #{tpu_custom_call.1} parent=1 // pred_region
      _
    $region25: #{tpu_custom_call.1} parent=1 // pred_fallthru
      _
    // Predicated region
    $region26: #{tpu_custom_call.1} parent=1 // pred_check
      _
    $region27: #{tpu_custom_call.1} parent=1 // pred_check_branch
      %28 = sbr.rel (0) target = $region29
    $region28: #{tpu_custom_call.1} parent=1 // pred_region
      _
    $region29: #{tpu_custom_call.1} parent=1 // pred_fallthru
      _
    %v29 = vld [vmem:[%s0] sm:$0xff]
    %v30 = vld [vmem:[%s0 + $0x8] sm:$0xff]
    %v31 = vld [vmem:[%s1] sm:$0xff]
    %v32 = vld [vmem:[%s1 + $0x8] sm:$0xff]
    %v33 = vld [vmem:[%s1 + $0x10] sm:$0xff]
    %v34 = vld [vmem:[%s1 + $0x18] sm:$0xff]
    %vm35 = vcmask 261120
    %v37 = vsel %vm35, %v29, 0
    %v40 = vsel %vm35, %v30, 0
    %42 = vmatpush.msra.mxu0 0.0
    %43 = vmatpush.msra.mxu0 0.0
    %44 = vmatpush.msra.mxu0 0.0
    %45 = vmatpush.msra.mxu0 0.0
    %46 = vmatpush.msra.mxu0 0.0
    %47 = vmatpush.msra.mxu0 0.0
    %48 = vmatpush.msra.mxu0 0.0
    %49 = vmatpush.msra.mxu0 0.0
    %50 = vmatpush.msra.mxu0 0.0
    %51 = vmatpush.msra.mxu0 0.0
    %52 = vmatpush.msra.mxu0 0.0
    %53 = vmatpush.msra.mxu0 0.0
    %54 = vmatpush.msra.mxu0 %v34
    %55 = vmatpush.msra.mxu0 %v33
    %56 = vmatpush.msra.mxu0 %v32
    %57 = vmatpush.msra.mxu0 %v31
    %58 = vmatmul.f32.gmra.mxu0 %v37
    %v59 = vpop.f32.mrf.mxu0
    %v60 = vadd.f32 0.0, %v59
    %61 = vmatmul.f32.gmra.mxu0 %v40
    %v62 = vpop.f32.mrf.mxu0
    %v63 = vadd.f32 0.0, %v62
    %64 = vdwg.mxu0
    %65 = vxpose.xlu0.b32.start [1/16] %v60, 128
    %66 = vxpose.xlu0.b32.cont [2/16] %v63, 128
    %67 = vxpose.xlu0.b32.cont [3/16] 0.0, 128
    %68 = vxpose.xlu0.b32.cont [4/16] 0.0, 128
    %69 = vxpose.xlu0.b32.cont [5/16] 0.0, 128
    %70 = vxpose.xlu0.b32.cont [6/16] 0.0, 128
    %71 = vxpose.xlu0.b32.cont [7/16] 0.0, 128
    %72 = vxpose.xlu0.b32.cont [8/16] 0.0, 128
    %73 = vxpose.xlu0.b32.cont [9/16] 0.0, 128
    %74 = vxpose.xlu0.b32.cont [10/16] 0.0, 128
    %75 = vxpose.xlu0.b32.cont [11/16] 0.0, 128
    %76 = vxpose.xlu0.b32.cont [12/16] 0.0, 128
    %77 = vxpose.xlu0.b32.cont [13/16] 0.0, 128
    %78 = vxpose.xlu0.b32.cont [14/16] 0.0, 128
    %79 = vxpose.xlu0.b32.cont [15/16] 0.0, 128
    %80 = vxpose.xlu0.b32.end [16/16] 0.0, 128
    %v81 = vpop.trf.xlu0
    %v82 = vpop.trf.xlu0
    %v83 = vpop.trf.xlu0
    %v84 = vpop.trf.xlu0
    %v85 = vpop.trf.xlu0
    %v86 = vpop.trf.xlu0
    %v87 = vpop.trf.xlu0
    %v88 = vpop.trf.xlu0
    %v89 = vpop.trf.xlu0
    %v90 = vpop.trf.xlu0
    %v91 = vpop.trf.xlu0
    %v92 = vpop.trf.xlu0
    %v93 = vpop.trf.xlu0
    %v94 = vpop.trf.xlu0
    %v95 = vpop.trf.xlu0
    %v96 = vpop.trf.xlu0
    %v97 = vld [vmem:[%s2] sm:$0xff]
    %v98 = vld [vmem:[%s2 + $0x8] sm:$0x3]
    %100 = vset.pattern.permute.xlu0 0
    %101 = vperm.xlu0 %100, %v97
    %v102 = vpop.permute.xlu0 %101
    %105 = vset.pattern.permute.xlu0 0
    %106 = vperm.xlu0 %105, %v98
    %v107 = vpop.permute.xlu0 %106
    %v109 = vadd.f32 %v81, %v102
    %v110 = vadd.f32 %v82, %v107
    %v111 = vmax.f32 %v109, 0.0
    %v112 = vmax.f32 %v110, 0.0
    %v113 = vld [vmem:[%s3] sm:$0x1f]
    %v114 = vld [vmem:[%s4] sm:$0x1f]
    %116 = vset.pattern.permute.xlu0 0
    %117 = vperm.xlu0 %116, %v114
    %v118 = vpop.permute.xlu0 %117
    %vm120 = vcmask 80896
    %v122 = vsel %vm120, %v113, 0
    %vm124 = vcmask 1041408
    %v126 = vsel %vm124, %v112, 0
    %128 = vmatpush.msra.mxu0 0.0
    %129 = vmatpush.msra.mxu0 0.0
    %130 = vmatpush.msra.mxu0 0.0
    %131 = vmatpush.msra.mxu0 0.0
    %132 = vmatpush.msra.mxu0 0.0
    %133 = vmatpush.msra.mxu0 0.0
    %134 = vmatpush.msra.mxu0 0.0
    %135 = vmatpush.msra.mxu0 0.0
    %136 = vmatpush.msra.mxu0 0.0
    %137 = vmatpush.msra.mxu0 0.0
    %138 = vmatpush.msra.mxu0 0.0
    %139 = vmatpush.msra.mxu0 0.0
    %140 = vmatpush.msra.mxu0 0.0
    %141 = vmatpush.msra.mxu0 0.0
    %142 = vmatpush.msra.mxu0 %v126
    %143 = vmatpush.msra.mxu0 %v111
    %144 = vmatmul.f32.gmra.mxu0 %v122
    %v145 = vpop.f32.mrf.mxu0
    %v146 = vadd.f32 %v118, %v145
    %147 = vdwg.mxu0
    %v148 = vmax.f32 %v146, 0.0
    %v149 = vld [vmem:[%s5] sm:$0x1f]
    %151 = vset.pattern.permute.xlu0 0
    %152 = vperm.xlu0 %151, %v149
    %v153 = vpop.permute.xlu0 %152
    %v155 = vmul.f32 %v148, %v153
    %vm156 = vcmask 126976
    %v157 = vsel %vm156, %v155, 0.0
    %v158 = vrot.slane %v157, 4
    %v159 = vadd.f32 %v157, %v158
    %v160 = vrot.slane %v159, 2
    %v161 = vadd.f32 %v159, %v160
    %v162 = vrot.slane %v161, 1
    %v163 = vadd.f32 %v161, %v162
    %v164 = vld [vmem:[#allocation2] sm:$0x1]
    %166 = vset.pattern.permute.xlu0 0
    %167 = vperm.xlu0 %166, %v164
    %v168 = vpop.permute.xlu0 %167
    %v170 = vperm.slane %v168, 0
    %v171 = vadd.f32 %v163, %v170
    %v172 = vxor.u32 %v171, 2147483648
    %v173 = vmul.f32 %v172, 1.442695
    %v174 = vpow.pop %v173
    %v175 = vadd.f32 %v174, 1.0
    %v176 = vrcp.pop %v175
    %v177 = vmul.f32 %v175, %v176
    %v178 = vsub.f32 1.0, %v177
    %v179 = vmul.f32 %v176, %v178
    %v180 = vadd.f32 %v176, %v179
    %vm181 = vweird.f32 %v175
    %vm182 = vweird.f32 %v176
    %vm183 = vmor %vm181, %vm182
    %v184 = vsel %vm183, %v176, %v180
    %v185 = vand.u32 2147483647, %v175
    %vm186 = vcmp.eq.f32.partialorder %v185, 8.507059e+37
    %v187 = vand.u32 %v175, 2147483648
    %v188 = vor.u32 1.1754944e-38, %v187
    %v189 = vsel %vm186, %v188, %v184
    %v190 = vmul.f32 1.0, %v189
    %vm191 = vcmask 122880
    %192 = vst.msk [vmem:[#allocation3] sm:$0x1] %vm191, %v190
    // Predicated region
    $region30: #{tpu_custom_call.1} parent=1 // pred_check
      _
    $region31: #{tpu_custom_call.1} parent=1 // pred_check_branch
      %194 = sbr.rel (0) target = $region33
    $region32: #{tpu_custom_call.1} parent=1 // pred_region
      %196 = vsyncadd [#allocation4], 0
      %s198 = sshll.u32 [#allocation3], 4
      %s199 = int_to_ptr.vmem [resolvable:$true] %s198
      %s200 = sshll.u32 %s7, 4
      %s201 = int_to_ptr.hbm [resolvable:$true] %s200
      %203 = dma.vmem_to_hbm [thread:$0]  %s199, 16, %s201, [#allocation4]
    $region33: #{tpu_custom_call.1} parent=1 // pred_fallthru
      _
    // Predicated region
    $region34: #{tpu_custom_call.1} parent=1 // pred_check
      _
    $region35: #{tpu_custom_call.1} parent=1 // pred_check_branch
      %205 = sbr.rel (0) target = $region37
    $region36: #{tpu_custom_call.1} parent=1 // pred_region
      %207 = dma.done [#allocation4], 16
    $region37: #{tpu_custom_call.1} parent=1 // pred_fallthru
      _
    %208 = vsyncpa [#allocation4], 1

</llo_original>
